<compile_context>
chip_gen: v7x
topology: tpu7x:2x2x1
jax: 0.10.0
libtpu: 0.0.40
codegen_flags: <defaults>
</compile_context>

<pallas_src>
import functools

import jax
import jax.numpy as jnp
from jax.experimental import pallas as pl
from jax.experimental.pallas import tpu as pltpu


_SQRT_HALF = 0.7071067811865476


# ----------------------------- in-kernel helpers ------------------------------

def _gelu_exact(x):
    # torch.nn.GELU default: 0.5 * x * (1 + erf(x / sqrt(2)))
    return 0.5 * x * (1.0 + jax.lax.erf(x * jnp.float32(_SQRT_HALF)))


def _hash_keep_mask(seed, shape, threshold):
    """Non-TPU fallback dropout mask: counter-based fmix32 hash, uint32 compare."""
    rows = jax.lax.broadcasted_iota(jnp.int32, shape, 0).astype(jnp.uint32)
    cols = jax.lax.broadcasted_iota(jnp.int32, shape, 1).astype(jnp.uint32)
    blk = ((pl.program_id(0) * pl.num_programs(1) + pl.program_id(1))
           * pl.num_programs(2) + pl.program_id(2)).astype(jnp.uint32)
    h = (rows * jnp.uint32(shape[1]) + cols) * jnp.uint32(0x9E3779B9)
    h = h + seed.astype(jnp.uint32) + blk * jnp.uint32(0x85EBCA6B)
    h = h ^ (h >> jnp.uint32(16))
    h = h * jnp.uint32(0x85EBCA6B)
    h = h ^ (h >> jnp.uint32(13))
    h = h * jnp.uint32(0xC2B2AE35)
    h = h ^ (h >> jnp.uint32(16))
    return h >= jnp.uint32(threshold)


def _keep_mask(seed_ref, shape, threshold, use_hw_prng):
    """Dropout keep-mask: P(keep) = 1 - p with threshold = round(p * 2**32)."""
    if use_hw_prng:
        # Per-block seeding keeps every grid block on an independent, deterministic
        # stream regardless of megacore sharding / iteration order.
        pltpu.prng_seed(seed_ref[0], pl.program_id(0), pl.program_id(1),
                        pl.program_id(2))
        bits = pltpu.prng_random_bits(shape)
        if bits.dtype != jnp.uint32:
            bits = pltpu.bitcast(bits, jnp.uint32)
        return bits >= jnp.uint32(threshold)
    return _hash_keep_mask(seed_ref[0], shape, threshold)


# --------------------------------- kernels ------------------------------------

def _stats_kernel(seed_ref, x_ref, g_ref, sum_ref, sq_ref, acc_s, acc_q, *,
                  threshold, apply_dropout, use_hw_prng, hw_tile):
    """Pass 1: g = dropout(gelu(x)) (unscaled), stash g, lane-wide partial sums."""
    hw = pl.program_id(2)

    @pl.when(hw == 0)
    def _():
        acc_s[...] = jnp.zeros_like(acc_s)
        acc_q[...] = jnp.zeros_like(acc_q)

    g = _gelu_exact(x_ref[...].astype(jnp.float32))
    if apply_dropout:
        keep = _keep_mask(seed_ref, g.shape, threshold, use_hw_prng)
        g = jnp.where(keep, g, jnp.float32(0.0))   # 1/(1-p) folded into wrapper scale

    # Stash the activation so pass 2 never recomputes erf / dropout.
    g_ref[...] = g.astype(g_ref.dtype)

    # Lane-wide partial sums: add 128-lane columns (cheap, 128-aligned vreg selects);
    # the cross-lane reduce happens only in the epilogue below.
    g2 = g * g
    s = g[:, 0:128]
    q = g2[:, 0:128]
    for i in range(1, hw_tile // 128):
        lo = i * 128
        s = s + g[:, lo:lo + 128]
        q = q + g2[:, lo:lo + 128]
    acc_s[...] += s
    acc_q[...] += q

    @pl.when(hw == pl.num_programs(2) - 1)
    def _():
        sum_ref[...] = jnp.sum(acc_s[...], axis=1, keepdims=True)
        sq_ref[...] = jnp.sum(acc_q[...], axis=1, keepdims=True)


def _norm_kernel(g_ref, scale_ref, shift_ref, o_ref):
    """Pass 2: y = g * scale + shift (BN affine with dropout 1/(1-p) folded in)."""
    g = g_ref[...].astype(jnp.float32)
    o_ref[...] = (g * scale_ref[...] + shift_ref[...]).astype(o_ref.dtype)


# --------------------------------- wrapper -------------------------------------

def _vmem_capacity_bytes():
    try:
        return int(pltpu.get_tpu_info().vmem_capacity_bytes)
    except Exception:
        return 64 * 1024 * 1024        # assume the most restrictive generation (v7x)


def _compiler_params(dim_sem, vmem_limit_bytes):
    cls = getattr(pltpu, "CompilerParams", None) or getattr(pltpu, "TPUCompilerParams", None)
    if cls is None:
        return None
    return cls(dimension_semantics=dim_sem, vmem_limit_bytes=int(vmem_limit_bytes))


def _largest_divisor_tile(dim, granule, cap):
    """Largest multiple of `granule` dividing `dim`, <= cap; full dim if it fits."""
    cap = max((cap // granule) * granule, granule)
    if dim <= cap:
        return dim
    best = granule
    t = granule
    while t <= cap:
        if dim % t == 0:
            best = t
        t += granule
    return best


def gelu_batch(x, gamma, beta, seed=0, *, p=0.3, eps=1e-5, training=True,
               stash_dtype=jnp.bfloat16):
    """GeluBatch forward. x: (N, C, H, W); gamma/beta: (C,)."""
    N, C, H, W = x.shape
    HW = H * W
    M = N * HW

    # ---- generation-aware tile sizing -----------------------------------------
    phys_vmem = _vmem_capacity_bytes()
    vmem_limit = min((phys_vmem * 3) // 4, 64 * 1024 * 1024)   # 48 MiB v7x, 64 MiB v5e/v6e
    stash_bytes = jnp.dtype(stash_dtype).itemsize
    per_elem_live = 2 * (x.dtype.itemsize + stash_bytes)        # double-buffered in+out
    elem_budget = max((vmem_limit - 8 * 1024 * 1024) // per_elem_live, 8 * 128)

    HWp = -(-HW // 128) * 128                                   # lane-dense padding
    hw_cap = max((min(elem_budget // 8, 8192) // 128) * 128, 128)
    if HWp <= hw_cap:
        hw_tile = HWp                                           # one contiguous DMA row set
    else:
        hw_tile = _largest_divisor_tile(HWp, 128, hw_cap)

    c_cap = max((min(elem_budget // hw_tile, 128) // 8) * 8, 8)
    if C <= c_cap:
        Cp, c_tile = C, C                                       # full channel dim (always legal)
    else:
        Cp = -(-C // 16) * 16                                   # 16-granule: bf16 stash packing
        c_tile = _largest_divisor_tile(Cp, 16, max((c_cap // 16) * 16, 16))

    # ---- pad to tile-friendly shape (gelu(0)=0 -> padding adds 0 to the sums) ----
    x3 = x.reshape(N, C, HW)                                    # free view, no HBM transpose
    if Cp != C or HWp != HW:
        x3 = jnp.pad(x3, ((0, 0), (0, Cp - C), (0, HWp - HW)))
    seed_arr = jnp.asarray([seed], dtype=jnp.int32)

    grid = (Cp // c_tile, N, HWp // hw_tile)
    apply_dropout = bool(training) and float(p) > 0.0
    threshold = min(int(round(float(p) * 2.0 ** 32)), 2 ** 32 - 1)
    use_hw_prng = jax.default_backend() == "tpu"

    smem_spec = pl.BlockSpec(memory_space=pltpu.MemorySpace.SMEM)
    x_spec = pl.BlockSpec((None, c_tile, hw_tile), lambda c, n, hw: (n, c, hw))
    cvec_spec = pl.BlockSpec((c_tile, 1), lambda c, n, hw: (c, 0))
    nvec_spec = pl.BlockSpec((None, c_tile, 1), lambda c, n, hw: (n, c, 0))

    # ---- pass 1: activation + dropout, bf16 stash, per-(n, channel) partial sums ----
    g_stash, psum, psq = pl.pallas_call(
        functools.partial(_stats_kernel, threshold=threshold,
                          apply_dropout=apply_dropout, use_hw_prng=use_hw_prng,
                          hw_tile=hw_tile),
        out_shape=(jax.ShapeDtypeStruct((N, Cp, HWp), stash_dtype),
                   jax.ShapeDtypeStruct((N, Cp, 1), jnp.float32),
                   jax.ShapeDtypeStruct((N, Cp, 1), jnp.float32)),
        grid=grid,
        in_specs=[smem_spec, x_spec],
        out_specs=(x_spec, nvec_spec, nvec_spec),
        scratch_shapes=[pltpu.VMEM((c_tile, 128), jnp.float32),
                        pltpu.VMEM((c_tile, 128), jnp.float32)],
        compiler_params=_compiler_params(("parallel", "parallel", "arbitrary"),
                                         vmem_limit),
    )(seed_arr, x3)

    # ---- tiny (C,) math: fold batch stats, affine and 1/(1-p) into (scale, shift) ----
    inv_keep = (1.0 / (1.0 - float(p))) if apply_dropout else 1.0
    sum_g = jnp.sum(psum[:, :C, 0], axis=0)                     # stash is unscaled g
    sum_g2 = jnp.sum(psq[:, :C, 0], axis=0)
    mean = sum_g * jnp.float32(inv_keep / M)
    ex2 = sum_g2 * jnp.float32(inv_keep * inv_keep / M)
    var = jnp.maximum(ex2 - mean * mean, 0.0)                   # biased variance (training BN)
    bn_scale = gamma.astype(jnp.float32) * jax.lax.rsqrt(var + jnp.float32(eps))
    shift = beta.astype(jnp.float32) - mean * bn_scale
    scale = bn_scale * jnp.float32(inv_keep)                    # dropout scale folded here
    if Cp != C:
        scale = jnp.pad(scale, (0, Cp - C))
        shift = jnp.pad(shift, (0, Cp - C))

    # ---- pass 2: y = g*scale + shift, lane-dense, fully pipelined -----------------
    out3 = pl.pallas_call(
        _norm_kernel,
        out_shape=jax.ShapeDtypeStruct((N, Cp, HWp), x.dtype),
        grid=grid,
        in_specs=[x_spec, cvec_spec, cvec_spec],
        out_specs=x_spec,
        compiler_params=_compiler_params(("parallel", "parallel", "arbitrary"),
                                         vmem_limit),
    )(g_stash, scale.reshape(Cp, 1), shift.reshape(Cp, 1))

    if Cp != C or HWp != HW:
        out3 = out3[:, :C, :HW]
    return out3.reshape(N, C, H, W)


# ------------------------------ reference (p = 0) ------------------------------

def _reference_gelu_batch(x, gamma, beta, eps=1e-5, stash_dtype=None):
    g = 0.5 * x * (1.0 + jax.lax.erf(x * jnp.float32(_SQRT_HALF)))
    mean = jnp.mean(g, axis=(0, 2, 3), keepdims=True)
    var = jnp.mean(jnp.square(g - mean), axis=(0, 2, 3), keepdims=True)
    scale = gamma.reshape(1, -1, 1, 1) * jax.lax.rsqrt(var + jnp.float32(eps))
    shift = beta.reshape(1, -1, 1, 1) - mean * scale
    if stash_dtype is not None:                    # mirror the kernel's activation stash
        g = g.astype(stash_dtype).astype(jnp.float32)
    return g * scale + shift


if __name__ == "__main__":
    key = jax.random.PRNGKey(0)
    N, C, H, W = 2, 4, 16, 16                      # BatchNorm2d(size=C=4)
    x = jax.random.normal(key, (N, C, H, W), dtype=jnp.float32)

    # PyTorch BatchNorm2d default init: weight=1, bias=0
    gamma = jnp.ones((C,), dtype=jnp.float32)
    beta = jnp.zeros((C,), dtype=jnp.float32)

    # deterministic path (p=0): compare against pure-JAX references
    out0 = gelu_batch(x, gamma, beta, seed=0, p=0.0, training=True)
    jax.block_until_ready(out0)
    assert out0.shape == (N, C, H, W)
    ref_exact = _reference_gelu_batch(x, gamma, beta)
    ref_bf16 = _reference_gelu_batch(x, gamma, beta, stash_dtype=jnp.bfloat16)
    err_bf16 = float(jnp.max(jnp.abs(out0 - ref_bf16)))
    err_exact = float(jnp.max(jnp.abs(out0 - ref_exact)))
    assert err_bf16 < 1e-3, f"max abs err vs bf16-stash reference: {err_bf16}"
    assert err_exact < 5e-2, f"max abs err vs exact f32 reference: {err_exact}"

    # f32 stash path reproduces the exact reference
    out_f32 = gelu_batch(x, gamma, beta, seed=0, p=0.0, training=True,
                         stash_dtype=jnp.float32)
    jax.block_until_ready(out_f32)
    err_f32 = float(jnp.max(jnp.abs(out_f32 - ref_exact)))
    assert err_f32 < 1e-4, f"max abs err (f32 stash) vs reference: {err_f32}"

    # training path with dropout (p=0.3) using the hardware PRNG
    out = gelu_batch(x, gamma, beta, seed=123, p=0.3, training=True)
    jax.block_until_ready(out)
    assert out.shape == (N, C, H, W)
    assert bool(jnp.all(jnp.isfinite(out)))

    print("KERNEL_OK")
</pallas_src>

<mosaic_0001>
module attributes {stable_mosaic.version = 11 : i64} {
  func.func @_stats_kernel(%arg0: i32, %arg1: i32, %arg2: i32, %arg3: memref<1xi32, #tpu.memory_space<smem>>, %arg4: memref<1x4x256xf32, #tpu.memory_space<vmem>>, %arg5: memref<1x4x256xbf16, #tpu.memory_space<vmem>>, %arg6: memref<1x4x1xf32, #tpu.memory_space<vmem>>, %arg7: memref<1x4x1xf32, #tpu.memory_space<vmem>>, %arg8: memref<4x128xf32, #tpu.memory_space<vmem>>, %arg9: memref<4x128xf32, #tpu.memory_space<vmem>>) attributes {dimension_semantics = [#tpu.dimension_semantics<parallel>, #tpu.dimension_semantics<parallel>, #tpu.dimension_semantics<arbitrary>], iteration_bounds = array<i64: 1, 2, 1>, scalar_prefetch = 0 : i64, scratch_operands = 2 : i64, tpu.core_type = #tpu.core_type<tc>, window_params = [{transform_indices = @transform_0, window_bounds = array<i64: 1>}, {transform_indices = @transform_1, window_bounds = array<i64: 1, 4, 256>}, {transform_indices = @transform_2, window_bounds = array<i64: 1, 4, 256>}, {transform_indices = @transform_3, window_bounds = array<i64: 1, 4, 1>}, {transform_indices = @transform_4, window_bounds = array<i64: 1, 4, 1>}]} {
    %c0_i32 = arith.constant 0 : i32
    %0 = arith.cmpi eq, %arg2, %c0_i32 : i32
    %1 = arith.extui %0 : i1 to i32
    %c0_i32_0 = arith.constant 0 : i32
    %2 = arith.cmpi ne, %1, %c0_i32_0 : i32
    scf.if %2 {
      %cst_18 = arith.constant 0.000000e+00 : f32
      %33 = vector.broadcast %cst_18 : f32 to vector<4x128xf32>
      %c0_19 = arith.constant 0 : index
      %c0_20 = arith.constant 0 : index
      %34 = vector.load %arg8[%c0_19, %c0_20] : memref<4x128xf32, #tpu.memory_space<vmem>>, vector<4x128xf32>
      tpu.vector_store %arg8[%c0_19, %c0_20], %33 {strides = array<i32>} : memref<4x128xf32, #tpu.memory_space<vmem>>, vector<4x128xf32>,
      %cst_21 = arith.constant 0.000000e+00 : f32
      %35 = vector.broadcast %cst_21 : f32 to vector<4x128xf32>
      %c0_22 = arith.constant 0 : index
      %c0_23 = arith.constant 0 : index
      %36 = vector.load %arg9[%c0_22, %c0_23] : memref<4x128xf32, #tpu.memory_space<vmem>>, vector<4x128xf32>
      tpu.vector_store %arg9[%c0_22, %c0_23], %35 {strides = array<i32>} : memref<4x128xf32, #tpu.memory_space<vmem>>, vector<4x128xf32>,
    } else {
    }
    %c0 = arith.constant 0 : index
    %c0_1 = arith.constant 0 : index
    %c0_2 = arith.constant 0 : index
    %3 = vector.load %arg4[%c0, %c0_1, %c0_2] : memref<1x4x256xf32, #tpu.memory_space<vmem>>, vector<1x4x256xf32>
    %4 = vector.shape_cast %3 : vector<1x4x256xf32> to vector<4x256xf32>
    %cst = arith.constant 5.000000e-01 : f32
    %5 = vector.broadcast %cst : f32 to vector<4x256xf32>
    %6 = arith.mulf %5, %4 : vector<4x256xf32>
    %cst_3 = arith.constant 0.707106769 : f32
    %7 = vector.broadcast %cst_3 : f32 to vector<4x256xf32>
    %8 = arith.mulf %4, %7 : vector<4x256xf32>
    %9 = math.erf %8 : vector<4x256xf32>
    %cst_4 = arith.constant 1.000000e+00 : f32
    %10 = vector.broadcast %cst_4 : f32 to vector<4x256xf32>
    %11 = arith.addf %10, %9 : vector<4x256xf32>
    %12 = arith.mulf %6, %11 : vector<4x256xf32>
    %13 = arith.truncf %12 : vector<4x256xf32> to vector<4x256xbf16>
    %c0_5 = arith.constant 0 : index
    %c0_6 = arith.constant 0 : index
    %c0_7 = arith.constant 0 : index
    %14 = vector.load %arg5[%c0_5, %c0_6, %c0_7] : memref<1x4x256xbf16, #tpu.memory_space<vmem>>, vector<1x4x256xbf16>
    %15 = vector.shape_cast %14 : vector<1x4x256xbf16> to vector<4x256xbf16>
    %16 = vector.shape_cast %13 : vector<4x256xbf16> to vector<1x4x256xbf16>
    tpu.vector_store %arg5[%c0_5, %c0_6, %c0_7], %16 {strides = array<i32>} : memref<1x4x256xbf16, #tpu.memory_space<vmem>>, vector<1x4x256xbf16>,
    %17 = arith.mulf %12, %12 : vector<4x256xf32>
    %18 = vector.extract_strided_slice %12 {offsets = [0, 0], sizes = [4, 128], strides = [1, 1]} : vector<4x256xf32> to vector<4x128xf32>
    %19 = vector.extract_strided_slice %17 {offsets = [0, 0], sizes = [4, 128], strides = [1, 1]} : vector<4x256xf32> to vector<4x128xf32>
    %20 = vector.extract_strided_slice %12 {offsets = [0, 128], sizes = [4, 128], strides = [1, 1]} : vector<4x256xf32> to vector<4x128xf32>
    %21 = arith.addf %18, %20 : vector<4x128xf32>
    %22 = vector.extract_strided_slice %17 {offsets = [0, 128], sizes = [4, 128], strides = [1, 1]} : vector<4x256xf32> to vector<4x128xf32>
    %23 = arith.addf %19, %22 : vector<4x128xf32>
    %c0_8 = arith.constant 0 : index
    %c0_9 = arith.constant 0 : index
    %24 = vector.load %arg8[%c0_8, %c0_9] : memref<4x128xf32, #tpu.memory_space<vmem>>, vector<4x128xf32>
    %25 = arith.addf %24, %21 : vector<4x128xf32>
    %c0_10 = arith.constant 0 : index
    %c0_11 = arith.constant 0 : index
    %26 = vector.load %arg8[%c0_10, %c0_11] : memref<4x128xf32, #tpu.memory_space<vmem>>, vector<4x128xf32>
    tpu.vector_store %arg8[%c0_10, %c0_11], %25 {strides = array<i32>} : memref<4x128xf32, #tpu.memory_space<vmem>>, vector<4x128xf32>,
    %c0_12 = arith.constant 0 : index
    %c0_13 = arith.constant 0 : index
    %27 = vector.load %arg9[%c0_12, %c0_13] : memref<4x128xf32, #tpu.memory_space<vmem>>, vector<4x128xf32>
    %28 = arith.addf %27, %23 : vector<4x128xf32>
    %c0_14 = arith.constant 0 : index
    %c0_15 = arith.constant 0 : index
    %29 = vector.load %arg9[%c0_14, %c0_15] : memref<4x128xf32, #tpu.memory_space<vmem>>, vector<4x128xf32>
    tpu.vector_store %arg9[%c0_14, %c0_15], %28 {strides = array<i32>} : memref<4x128xf32, #tpu.memory_space<vmem>>, vector<4x128xf32>,
    %c0_i32_16 = arith.constant 0 : i32
    %30 = arith.cmpi eq, %arg2, %c0_i32_16 : i32
    %31 = arith.extui %30 : i1 to i32
    %c0_i32_17 = arith.constant 0 : i32
    %32 = arith.cmpi ne, %31, %c0_i32_17 : i32
    scf.if %32 {
      %c0_18 = arith.constant 0 : index
      %c0_19 = arith.constant 0 : index
      %33 = vector.load %arg8[%c0_18, %c0_19] : memref<4x128xf32, #tpu.memory_space<vmem>>, vector<4x128xf32>
      %cst_20 = arith.constant dense<0.000000e+00> : vector<4xf32>
      %34 = vector.multi_reduction <add>, %33, %cst_20 [1] : vector<4x128xf32> to vector<4xf32>
      %35 = vector.shape_cast %34 : vector<4xf32> to vector<4x1xf32>
      %c0_21 = arith.constant 0 : index
      %c0_22 = arith.constant 0 : index
      %c0_23 = arith.constant 0 : index
      %36 = vector.load %arg6[%c0_21, %c0_22, %c0_23] : memref<1x4x1xf32, #tpu.memory_space<vmem>>, vector<1x4x1xf32>
      %37 = vector.shape_cast %36 : vector<1x4x1xf32> to vector<4x1xf32>
      %38 = vector.shape_cast %35 : vector<4x1xf32> to vector<1x4x1xf32>
      tpu.vector_store %arg6[%c0_21, %c0_22, %c0_23], %38 {strides = array<i32>} : memref<1x4x1xf32, #tpu.memory_space<vmem>>, vector<1x4x1xf32>,
      %c0_24 = arith.constant 0 : index
      %c0_25 = arith.constant 0 : index
      %39 = vector.load %arg9[%c0_24, %c0_25] : memref<4x128xf32, #tpu.memory_space<vmem>>, vector<4x128xf32>
      %cst_26 = arith.constant dense<0.000000e+00> : vector<4xf32>
      %40 = vector.multi_reduction <add>, %39, %cst_26 [1] : vector<4x128xf32> to vector<4xf32>
      %41 = vector.shape_cast %40 : vector<4xf32> to vector<4x1xf32>
      %c0_27 = arith.constant 0 : index
      %c0_28 = arith.constant 0 : index
      %c0_29 = arith.constant 0 : index
      %42 = vector.load %arg7[%c0_27, %c0_28, %c0_29] : memref<1x4x1xf32, #tpu.memory_space<vmem>>, vector<1x4x1xf32>
      %43 = vector.shape_cast %42 : vector<1x4x1xf32> to vector<4x1xf32>
      %44 = vector.shape_cast %41 : vector<4x1xf32> to vector<1x4x1xf32>
      tpu.vector_store %arg7[%c0_27, %c0_28, %c0_29], %44 {strides = array<i32>} : memref<1x4x1xf32, #tpu.memory_space<vmem>>, vector<1x4x1xf32>,
    } else {
    }
    return
  }
  func.func @transform_0(%arg0: i32, %arg1: i32, %arg2: i32) -> i32 {
    %c0_i32 = arith.constant 0 : i32
    %c0_i32_0 = arith.constant 0 : i32
    return %c0_i32 : i32
  }
  func.func @transform_1(%arg0: i32, %arg1: i32, %arg2: i32) -> (i32, i32, i32) {
    %c0_i32 = arith.constant 0 : i32
    return %arg1, %arg0, %arg2 : i32, i32, i32
  }
  func.func @transform_2(%arg0: i32, %arg1: i32, %arg2: i32) -> (i32, i32, i32) {
    %c0_i32 = arith.constant 0 : i32
    return %arg1, %arg0, %arg2 : i32, i32, i32
  }
  func.func @transform_3(%arg0: i32, %arg1: i32, %arg2: i32) -> (i32, i32, i32) {
    %c0_i32 = arith.constant 0 : i32
    %c0_i32_0 = arith.constant 0 : i32
    return %arg1, %arg0, %c0_i32 : i32, i32, i32
  }
  func.func @transform_4(%arg0: i32, %arg1: i32, %arg2: i32) -> (i32, i32, i32) {
    %c0_i32 = arith.constant 0 : i32
    %c0_i32_0 = arith.constant 0 : i32
    return %arg1, %arg0, %c0_i32 : i32, i32, i32
  }
}

</mosaic_0001>

<llo_original>
// kernel: tpu_custom_call.1
$region0: #{tpu_custom_call.1}
  #allocation0 [shape = 'u32[]', space=smem, size = 0x4, offset = 0x4, fixed_abs, tag = 'smem constant byte address 0x4 - core index']
  #allocation1 [shape = 'u32[144,128]{1,0:T(1,128)}', space=vmem, size = 0x12000, scoped, tag = 'internal scratch']
  #allocation2 [shape = 'f32[4,128]{1,0:T(4,128)}', space=vmem, size = 0x800, scoped, tag = 'scratch operand']
  #allocation3 [shape = 'f32[4,128]{1,0:T(4,128)}', space=vmem, size = 0x800, scoped, tag = 'scratch operand']
  #allocation4 [shape = 's32[1]{0:T(128)S(6)}', space=smem, size = 0x200, scoped, tag = 'scoped memory for tpu_custom_call.1']
  %s0 = inlined_call_operand.<no memory space> [shape: s32[1], index: 0, kind: input, shape index: {}]
  %s1 = inlined_call_operand.hbm [shape: f32[2,4,256], index: 1, kind: input, shape index: {}]
  %s2 = inlined_call_operand.hbm [shape: bf16[2,4,256], index: 2, kind: output, shape index: {0}]
  %s3 = inlined_call_operand.vmem [shape: f32[2,4,1], index: 3, kind: output, shape index: {1}]
  %s4 = inlined_call_operand.vmem [shape: f32[2,4,1], index: 4, kind: output, shape index: {2}]
  %5 = xla_tuple %s2, %s3, %s4
  %s6 = sld [smem:[#allocation0]]
  $region69: #{tpu_custom_call.1} parent=0
    _
  %s8 = ssub.s32 1, %s6
  %s9 = scalar_select 0, %s8, %s6
  %10 = sst [smem:[#allocation4]] %s0
  $region1: #{tpu_custom_call.1} parent=0
    #allocation5 [shape = 'u8[8192]{0}', space=vmem, size = 0x2000, scoped, tag = 'input window, operand 1']
    #allocation6 [shape = 's32[2]{0}', space=sflag, size = 0x8, scoped, tag = 'scoped memory for tpu_custom_call.1']
    #allocation7 [shape = 's32[2]{0}', space=sflag, size = 0x8, scoped, tag = 'scoped memory for tpu_custom_call.1']
    #allocation8 [shape = 'u8[4096]{0}', space=vmem, size = 0x1000, scoped, tag = 'output window, operand 0']
    %11 = vsyncpa [#allocation6], 0
    %s12 = scalar_lea.sflag [#allocation6], 1
    %13 = vsyncpa %s12, 0
    %14 = vsyncpa [#allocation7], 0
    %s15 = scalar_lea.sflag [#allocation7], 1
    %16 = vsyncpa %s15, 0
    loop: start=0, step=1, limit=4
    $region2: #{tpu_custom_call.1} parent=1 // loop_pre_header
      _
    $region3: #{tpu_custom_call.1} parent=1 // loop_header
      %s18 = sphi 0, %s22
      %p19 = scmp.ge.s32.totalorder %s18, 4
      %s25 = sphi 0, %s44
      %s26 = sphi 0, %s40
      %s27 = sphi 0, %s36
      %s28 = sphi 0, %s25
      %s29 = sphi 0, %s26
      %s30 = sphi 0, %s27
      %s31 = sphi 0, %s28
      %s32 = sphi 0, %s29
      %s33 = sphi 0, %s30
      %s45 = sphi 0, %s45
      %s47 = sphi 0, %s45
      %s48 = sphi 0, %s47
      %s62 = sphi 0, %s48
      %s72 = sphi 0, %s74
      %s75 = sphi 0, %s72
      %s76 = sphi 0, %s75
      %s92 = sphi 0, %s76
      %s102 = sphi 0, %s104
      %s105 = sphi 0, %s102
      %s106 = sphi 0, %s105
      %s122 = sphi 0, %s106
      %s130 = sphi 0, %s132
      %s133 = sphi 0, %s130
      %s134 = sphi 0, %s133
      %s150 = sphi 0, %s134
      %s158 = sphi 0, %s160
      %s161 = sphi 0, %s158
      %s162 = sphi 0, %s161
      %s178 = sphi 0, %s162
    $region4: #{tpu_custom_call.1} parent=1 // loop_header_branch
      %21 = sbr.rel (%p19) target = $region8
    $region5: #{tpu_custom_call.1} parent=1 // loop_body
      %s23 = ssub.s32 %s18, 1
      %s24 = ssub.s32 %s18, 2
      %s34 = sadd.s32 1, %s27
      %p35 = scmp.ge.s32.totalorder %s34, 1
      %s36 = scalar_select %p35, 0, %s34
      %s37 = sadd.s32 1, %s26
      %s38 = scalar_select %p35, %s37, %s26
      %p39 = scmp.ge.s32.totalorder %s38, 2
      %s40 = scalar_select %p39, 0, %s38
      %s41 = sadd.s32 1, %s25
      %s42 = scalar_select %p39, %s41, %s25
      %p43 = scmp.ge.s32.totalorder %s42, 1
      %s44 = scalar_select %p43, 0, %s42
      %s46 = sadd.s32 %s45, 1
      %p49 = scmp.eq.s32.totalorder %s18, 1
      %p50 = scmp.ne.s32.totalorder %s45, %s47
      %p51 = scmp.eq.s32.totalorder %s18, 0
      %p52 = por %p50, %p51
      %p53 = scmp.ne.s32.totalorder %s45, %s47
      %p54 = scmp.eq.s32.totalorder %s23, 1
      %p55 = por %p53, %p54
      %p56 = scmp.ne.s32.totalorder %s47, %s48
      %p57 = scmp.eq.s32.totalorder %s23, 0
      %p58 = por %p56, %p57
      %p59 = scmp.ne.s32.totalorder %s47, %s48
      %p60 = scmp.eq.s32.totalorder %s24, 1
      %p61 = por %p59, %p60
      %p63 = scmp.ne.s32.totalorder %s48, %s62
      %p64 = scmp.eq.s32.totalorder %s24, 0
      %p65 = por %p63, %p64
      %s66 = ssub.s32 %s26, %s40
      %s67 = ssub.s32 %s25, %s44
      %s68 = sor.u32 %s66, %s67
      %s69 = ssub.s32 %s27, %s36
      %s70 = sor.u32 %s68, %s69
      %p71 = scmp.eq.s32.totalorder %s70, 0
      %s73 = sadd.s32 %s72, 1
      %s74 = scalar_select %p71, %s72, %s73
      %p77 = pneg %p71
      %p78 = scmp.eq.s32.totalorder %s18, 1
      %p79 = por %p77, %p78
      %p80 = scmp.ne.s32.totalorder %s72, %s75
      %p81 = scmp.eq.s32.totalorder %s18, 0
      %p82 = por %p80, %p81
      %p83 = scmp.ne.s32.totalorder %s72, %s75
      %p84 = scmp.eq.s32.totalorder %s23, 1
      %p85 = por %p83, %p84
      %p86 = scmp.ne.s32.totalorder %s75, %s76
      %p87 = scmp.eq.s32.totalorder %s23, 0
      %p88 = por %p86, %p87
      %p89 = scmp.ne.s32.totalorder %s75, %s76
      %p90 = scmp.eq.s32.totalorder %s24, 1
      %p91 = por %p89, %p90
      %p93 = scmp.ne.s32.totalorder %s76, %s92
      %p94 = scmp.eq.s32.totalorder %s24, 0
      %p95 = por %p93, %p94
      %s96 = ssub.s32 %s26, %s40
      %s97 = ssub.s32 %s25, %s44
      %s98 = sor.u32 %s96, %s97
      %s99 = ssub.s32 %s27, %s36
      %s100 = sor.u32 %s98, %s99
      %p101 = scmp.eq.s32.totalorder %s100, 0
      %s103 = sadd.s32 %s102, 1
      %s104 = scalar_select %p101, %s102, %s103
      %p107 = pneg %p101
      %p108 = scmp.eq.s32.totalorder %s18, 1
      %p109 = por %p107, %p108
      %p110 = scmp.ne.s32.totalorder %s102, %s105
      %p111 = scmp.eq.s32.totalorder %s18, 0
      %p112 = por %p110, %p111
      %p113 = scmp.ne.s32.totalorder %s102, %s105
      %p114 = scmp.eq.s32.totalorder %s23, 1
      %p115 = por %p113, %p114
      %p116 = scmp.ne.s32.totalorder %s105, %s106
      %p117 = scmp.eq.s32.totalorder %s23, 0
      %p118 = por %p116, %p117
      %p119 = scmp.ne.s32.totalorder %s105, %s106
      %p120 = scmp.eq.s32.totalorder %s24, 1
      %p121 = por %p119, %p120
      %p123 = scmp.ne.s32.totalorder %s106, %s122
      %p124 = scmp.eq.s32.totalorder %s24, 0
      %p125 = por %p123, %p124
      %s126 = ssub.s32 %s26, %s40
      %s127 = ssub.s32 %s25, %s44
      %s128 = sor.u32 %s126, %s127
      %p129 = scmp.eq.s32.totalorder %s128, 0
      %s131 = sadd.s32 %s130, 1
      %s132 = scalar_select %p129, %s130, %s131
      %p135 = pneg %p129
      %p136 = scmp.eq.s32.totalorder %s18, 1
      %p137 = por %p135, %p136
      %p138 = scmp.ne.s32.totalorder %s130, %s133
      %p139 = scmp.eq.s32.totalorder %s18, 0
      %p140 = por %p138, %p139
      %p141 = scmp.ne.s32.totalorder %s130, %s133
      %p142 = scmp.eq.s32.totalorder %s23, 1
      %p143 = por %p141, %p142
      %p144 = scmp.ne.s32.totalorder %s133, %s134
      %p145 = scmp.eq.s32.totalorder %s23, 0
      %p146 = por %p144, %p145
      %p147 = scmp.ne.s32.totalorder %s133, %s134
      %p148 = scmp.eq.s32.totalorder %s24, 1
      %p149 = por %p147, %p148
      %p151 = scmp.ne.s32.totalorder %s134, %s150
      %p152 = scmp.eq.s32.totalorder %s24, 0
      %p153 = por %p151, %p152
      %s154 = ssub.s32 %s26, %s40
      %s155 = ssub.s32 %s25, %s44
      %s156 = sor.u32 %s154, %s155
      %p157 = scmp.eq.s32.totalorder %s156, 0
      %s159 = sadd.s32 %s158, 1
      %s160 = scalar_select %p157, %s158, %s159
      %p163 = pneg %p157
      %p164 = scmp.eq.s32.totalorder %s18, 1
      %p165 = por %p163, %p164
      %p166 = scmp.ne.s32.totalorder %s158, %s161
      %p167 = scmp.eq.s32.totalorder %s18, 0
      %p168 = por %p166, %p167
      %p169 = scmp.ne.s32.totalorder %s158, %s161
      %p170 = scmp.eq.s32.totalorder %s23, 1
      %p171 = por %p169, %p170
      %p172 = scmp.ne.s32.totalorder %s161, %s162
      %p173 = scmp.eq.s32.totalorder %s23, 0
      %p174 = por %p172, %p173
      %p175 = scmp.ne.s32.totalorder %s161, %s162
      %p176 = scmp.eq.s32.totalorder %s24, 1
      %p177 = por %p175, %p176
      %p179 = scmp.ne.s32.totalorder %s162, %s178
      %p180 = scmp.eq.s32.totalorder %s24, 0
      %p181 = por %p179, %p180
      %p182 = scmp.le.s32.totalorder 1, %s18
      %p183 = scmp.lt.s32.totalorder %s18, 3
      %p184 = pnand %p182, %p183
      %p185 = pneg %p184
      // Predicated region
      $region9: #{tpu_custom_call.1} parent=5 // pred_check
        _
      $region10: #{tpu_custom_call.1} parent=5 // pred_check_branch
        %187 = sbr.rel (%p184) target = $region12
      $region11: #{tpu_custom_call.1} parent=5 // pred_region
        %s188 = ssub.s32 %s18, 1
        // Predicated region
        $region13: #{tpu_custom_call.1} parent=11 // pred_check
          %p189 = pneg %p58
        $region14: #{tpu_custom_call.1} parent=11 // pred_check_branch
          %191 = sbr.rel (%p189) target = $region16
        $region15: #{tpu_custom_call.1} parent=11 // pred_region
          _
        $region16: #{tpu_custom_call.1} parent=11 // pred_fallthru
          _
      $region12: #{tpu_custom_call.1} parent=5 // pred_fallthru
        _
      %p192 = scmp.lt.s32.totalorder %s18, 2
      // Predicated region
      $region17: #{tpu_custom_call.1} parent=5 // pred_check
        %p193 = pneg %p192
      $region18: #{tpu_custom_call.1} parent=5 // pred_check_branch
        %195 = sbr.rel (%p193) target = $region20
      $region19: #{tpu_custom_call.1} parent=5 // pred_region
        // Predicated region
        $region21: #{tpu_custom_call.1} parent=19 // pred_check
          %p196 = pneg %p82
        $region22: #{tpu_custom_call.1} parent=19 // pred_check_branch
          %198 = sbr.rel (%p196) target = $region24
        $region23: #{tpu_custom_call.1} parent=19 // pred_region
          %s199 = sand.u32 %s72, 1
          %s200 = scalar_lea.sflag [#allocation6], %s199
          %s201 = sand.u32 %s72, 1
          %s202 = smul.addr %s201, 8
          %s203 = scalar_lea.vmem [#allocation5], %s202
          %s204 = smul.u32 2, %s27
          %s206 = ssub.s32 128, 128
          %207 = vsyncadd %s200, %s206
          %s208 = smul.addr %s25, 2
          %s209 = sadd.s32 %s204, %s208
          %s210 = smul.addr %s26, 2
          %s211 = sadd.s32 %s209, %s210
          %s212 = smul.addr %s211, 64
          %s213 = scalar_lea.hbm %s1, %s212
          %s215 = sshll.u32 %s203, 4
          %s216 = int_to_ptr.vmem [resolvable:$true] %s215
          %218 = dma.hbm_to_vmem [thread:$0]  %s213, 128, %s216, %s200
        $region24: #{tpu_custom_call.1} parent=19 // pred_fallthru
          _
      $region20: #{tpu_custom_call.1} parent=5 // pred_fallthru
        _
      %p219 = scmp.le.s32.totalorder 1, %s18
      %p220 = scmp.lt.s32.totalorder %s18, 3
      %p221 = pnand %p219, %p220
      %p222 = pneg %p221
      // Predicated region
      $region25: #{tpu_custom_call.1} parent=5 // pred_check
        _
      $region26: #{tpu_custom_call.1} parent=5 // pred_check_branch
        %224 = sbr.rel (%p221) target = $region28
      $region27: #{tpu_custom_call.1} parent=5 // pred_region
        %s225 = ssub.s32 %s18, 1
        %s226 = sand.u32 %s75, 1
        %s227 = scalar_lea.sflag [#allocation6], %s226
        %s228 = sand.u32 %s75, 1
        %s229 = smul.addr %s228, 8
        %s230 = scalar_lea.vmem [#allocation5], %s229
        // Predicated region
        $region29: #{tpu_custom_call.1} parent=27 // pred_check
          %p231 = pneg %p88
        $region30: #{tpu_custom_call.1} parent=27 // pred_check_branch
          %233 = sbr.rel (%p231) target = $region32
        $region31: #{tpu_custom_call.1} parent=27 // pred_region
          %234 = dma.done %s227, 128
        $region32: #{tpu_custom_call.1} parent=27 // pred_fallthru
          _
        %p235 = pneg %p58
        %p236 = pneg %p55
        %s237 = sand.u32 %s75, 1
        %s238 = scalar_lea.sflag [#allocation6], %s237
        %s239 = sand.u32 %s75, 1
        %s240 = smul.addr %s239, 8
        %s241 = scalar_lea.vmem [#allocation5], %s240
        %p242 = pneg %p88
        %p243 = pneg %p85
        %p244 = pneg %p118
        %p245 = pneg %p115
        %s246 = sand.u32 %s105, 1
        %s247 = scalar_lea.sflag [#allocation7], %s246
        %s248 = sand.u32 %s105, 1
        %s249 = smul.addr %s248, 4
        %s250 = scalar_lea.vmem [#allocation8], %s249
        %p251 = pneg %p146
        %p252 = pneg %p143
        %p253 = scmp.lt.s32.totalorder %s29, 1
        %s254 = scalar_select %p253, %s29, 1
        %p255 = scmp.lt.s32.totalorder %s28, 0
        %s256 = scalar_select %p255, %s28, 0
        %s257 = sadd.s32 %s256, %s254
        %s258 = smul.addr %s257, 4
        %s259 = scalar_lea.vmem %s3, %s258
        %p260 = pneg %p174
        %p261 = pneg %p171
        %p262 = scmp.lt.s32.totalorder %s29, 1
        %s263 = scalar_select %p262, %s29, 1
        %p264 = scmp.lt.s32.totalorder %s28, 0
        %s265 = scalar_select %p264, %s28, 0
        %s266 = sadd.s32 %s265, %s263
        %s267 = smul.addr %s266, 4
        %s268 = scalar_lea.vmem %s4, %s267
        %s269 = smul.u32 2, %s30
        %s270 = smul.u32 2, %s30
        %p271 = scmp.lt.s32.totalorder %s29, 1
        %s272 = scalar_select %p271, %s29, 1
        %p273 = scmp.lt.s32.totalorder %s28, 0
        %s274 = scalar_select %p273, %s28, 0
        %s275 = sadd.s32 %s274, %s272
        %s276 = smul.addr %s275, 4
        %s277 = scalar_lea.vmem %s3, %s276
        %p278 = scmp.lt.s32.totalorder %s29, 1
        %s279 = scalar_select %p278, %s29, 1
        %p280 = scmp.lt.s32.totalorder %s28, 0
        %s281 = scalar_select %p280, %s28, 0
        %s282 = sadd.s32 %s281, %s279
        %s283 = smul.addr %s282, 4
        %s284 = scalar_lea.vmem %s4, %s283
        %p285 = scmp.eq.s32.totalorder %s30, 0
        // Predicated region
        $region33: #{tpu_custom_call.1} parent=27 // pred_check
          %p286 = pneg %p285
        $region34: #{tpu_custom_call.1} parent=27 // pred_check_branch
          %288 = sbr.rel (%p286) target = $region36
        $region35: #{tpu_custom_call.1} parent=27 // pred_region
          %289 = vst [vmem:[#allocation2] sm:$0xf] 0.0
          %290 = vst [vmem:[#allocation3] sm:$0xf] 0.0
        $region36: #{tpu_custom_call.1} parent=27 // pred_fallthru
          _
        %v291 = vld [vmem:[%s230] sm:$0xff]
        %v292 = vmul.f32 %v291, 0.5
        %v293 = vmul.f32 %v291, 0.70710677
        %v294 = verf.f32.pop %v293
        %v295 = vadd.f32 %v294, 1.0
        %v296 = vmul.f32 %v292, %v295
        %v298 = vcombine.high %v296, %v296
        %v300 = vpack.c.bf16 %v296, %v296
        %v301 = vpack.c.bf16 %v298, %v298
        %v304 = vcombine.low %v300, %v301
        %v306 = vunpack.c.l.s4 1983009808
        %v307 = vunpack.c.0.s8 %v306
        %v308 = vlaneseq
        %v309 = vshrl.u32 %v308, 7
        %v310 = vsub.s32 %v307, %v309
        %v311 = vrot.slane %v304, %v310
        %313 = vst [vmem:[%s250] sm:$0xf] %v311
        %v314 = vmul.f32 %v296, %v296
        %v315 = vrot.slane %v296, 4
        %v317 = vadd.f32 %v296, %v315
        %v319 = vrot.slane %v314, 4
        %v321 = vadd.f32 %v314, %v319
        %v322 = vld [vmem:[#allocation2] sm:$0xf]
        %v323 = vadd.f32 %v322, %v317
        %324 = vst [vmem:[#allocation2] sm:$0xf] %v323
        %v325 = vld [vmem:[#allocation3] sm:$0xf]
        %v326 = vadd.f32 %v325, %v321
        %327 = vst [vmem:[#allocation3] sm:$0xf] %v326
        // Predicated region
        $region37: #{tpu_custom_call.1} parent=27 // pred_check
          %p328 = pneg %p285
        $region38: #{tpu_custom_call.1} parent=27 // pred_check_branch
          %330 = sbr.rel (%p328) target = $region40
        $region39: #{tpu_custom_call.1} parent=27 // pred_region
          %v331 = vld [vmem:[#allocation2] sm:$0xf]
          %vm332 = vcmask 1043456
          %v333 = vsel %vm332, %v331, 0.0
          %334 = vadd.xlane.f32.xlu0 %v333
          %v335 = vpop.xlane.xlu0 %334
          %vm336 = vcmask 3072
          %337 = vst.msk [vmem:[%s277] sm:$0xf] %vm336, %v335
          %v338 = vld [vmem:[#allocation3] sm:$0xf]
          %v339 = vsel %vm332, %v338, 0.0
          %340 = vadd.xlane.f32.xlu0 %v339
          %v341 = vpop.xlane.xlu0 %340
          %342 = vst.msk [vmem:[%s284] sm:$0xf] %vm336, %v341
        $region40: #{tpu_custom_call.1} parent=27 // pred_fallthru
          _
        %s343 = sand.u32 %s105, 1
        %s344 = scalar_lea.sflag [#allocation7], %s343
        %s345 = sand.u32 %s105, 1
        %s346 = smul.addr %s345, 4
        %s347 = scalar_lea.vmem [#allocation8], %s346
        %p348 = scmp.lt.s32.totalorder %s29, 1
        %s349 = scalar_select %p348, %s29, 1
        %p350 = scmp.lt.s32.totalorder %s28, 0
        %s351 = scalar_select %p350, %s28, 0
        %s352 = sadd.s32 %s351, %s349
        %s353 = smul.addr %s352, 4
        %s354 = scalar_lea.vmem %s3, %s353
        %p355 = scmp.lt.s32.totalorder %s29, 1
        %s356 = scalar_select %p355, %s29, 1
        %p357 = scmp.lt.s32.totalorder %s28, 0
        %s358 = scalar_select %p357, %s28, 0
        %s359 = sadd.s32 %s358, %s356
        %s360 = smul.addr %s359, 4
        %s361 = scalar_lea.vmem %s4, %s360
        // Predicated region
        $region41: #{tpu_custom_call.1} parent=27 // pred_check
          %p362 = pneg %p115
        $region42: #{tpu_custom_call.1} parent=27 // pred_check_branch
          %364 = sbr.rel (%p362) target = $region44
        $region43: #{tpu_custom_call.1} parent=27 // pred_region
          %s365 = smul.u32 2, %s30
          %s367 = ssub.s32 64, 64
          %368 = vsyncadd %s344, %s367
          %s369 = smul.addr %s28, 2
          %s370 = sadd.s32 %s365, %s369
          %s371 = smul.addr %s29, 2
          %s372 = sadd.s32 %s370, %s371
          %s373 = smul.addr %s372, 32
          %s374 = scalar_lea.hbm %s2, %s373
          %s376 = sshll.u32 %s347, 4
          %s377 = int_to_ptr.vmem [resolvable:$true] %s376
          %379 = dma.vmem_to_hbm [thread:$0]  %s377, 64, %s374, %s344
        $region44: #{tpu_custom_call.1} parent=27 // pred_fallthru
          _
        // Predicated region
        $region45: #{tpu_custom_call.1} parent=27 // pred_check
          %p380 = pneg %p143
        $region46: #{tpu_custom_call.1} parent=27 // pred_check_branch
          %382 = sbr.rel (%p380) target = $region48
        $region47: #{tpu_custom_call.1} parent=27 // pred_region
          _
        $region48: #{tpu_custom_call.1} parent=27 // pred_fallthru
          _
        // Predicated region
        $region49: #{tpu_custom_call.1} parent=27 // pred_check
          %p383 = pneg %p171
        $region50: #{tpu_custom_call.1} parent=27 // pred_check_branch
          %385 = sbr.rel (%p383) target = $region52
        $region51: #{tpu_custom_call.1} parent=27 // pred_region
          _
        $region52: #{tpu_custom_call.1} parent=27 // pred_fallthru
          _
      $region28: #{tpu_custom_call.1} parent=5 // pred_fallthru
        _
      %p386 = scmp.le.s32.totalorder 2, %s18
      // Predicated region
      $region53: #{tpu_custom_call.1} parent=5 // pred_check
        %p387 = pneg %p386
      $region54: #{tpu_custom_call.1} parent=5 // pred_check_branch
        %389 = sbr.rel (%p387) target = $region56
      $region55: #{tpu_custom_call.1} parent=5 // pred_region
        %s390 = ssub.s32 %s18, 2
        // Predicated region
        $region57: #{tpu_custom_call.1} parent=55 // pred_check
          %p391 = pneg %p121
        $region58: #{tpu_custom_call.1} parent=55 // pred_check_branch
          %393 = sbr.rel (%p391) target = $region60
        $region59: #{tpu_custom_call.1} parent=55 // pred_region
          %s394 = sand.u32 %s106, 1
          %s395 = scalar_lea.sflag [#allocation7], %s394
          %s396 = sand.u32 %s106, 1
          %s397 = smul.addr %s396, 4
          %s398 = scalar_lea.vmem [#allocation8], %s397
          %399 = dma.done %s395, 64
        $region60: #{tpu_custom_call.1} parent=55 // pred_fallthru
          _
        // Predicated region
        $region61: #{tpu_custom_call.1} parent=55 // pred_check
          %p400 = pneg %p149
        $region62: #{tpu_custom_call.1} parent=55 // pred_check_branch
          %402 = sbr.rel (%p400) target = $region64
        $region63: #{tpu_custom_call.1} parent=55 // pred_region
          %p403 = scmp.lt.s32.totalorder %s32, 1
          %s404 = scalar_select %p403, %s32, 1
          %p405 = scmp.lt.s32.totalorder %s31, 0
          %s406 = scalar_select %p405, %s31, 0
          %s407 = sadd.s32 %s406, %s404
          %s408 = smul.addr %s407, 4
          %s409 = scalar_lea.vmem %s3, %s408
        $region64: #{tpu_custom_call.1} parent=55 // pred_fallthru
          _
        // Predicated region
        $region65: #{tpu_custom_call.1} parent=55 // pred_check
          %p410 = pneg %p177
        $region66: #{tpu_custom_call.1} parent=55 // pred_check_branch
          %412 = sbr.rel (%p410) target = $region68
        $region67: #{tpu_custom_call.1} parent=55 // pred_region
          %p413 = scmp.lt.s32.totalorder %s32, 1
          %s414 = scalar_select %p413, %s32, 1
          %p415 = scmp.lt.s32.totalorder %s31, 0
          %s416 = scalar_select %p415, %s31, 0
          %s417 = sadd.s32 %s416, %s414
          %s418 = smul.addr %s417, 4
          %s419 = scalar_lea.vmem %s4, %s418
        $region68: #{tpu_custom_call.1} parent=55 // pred_fallthru
          _
      $region56: #{tpu_custom_call.1} parent=5 // pred_fallthru
        _
    $region6: #{tpu_custom_call.1} parent=1 // loop_footer
      %s22 = sadd.s32 1, %s18
    $region7: #{tpu_custom_call.1} parent=1 // loop_footer_branch
      %17 = sbr.rel target = $region3
    $region8: #{tpu_custom_call.1} parent=1 // loop_exit
      _
    %420 = vsyncpa [#allocation6], 1
    %s421 = scalar_lea.sflag [#allocation6], 1
    %422 = vsyncpa %s421, 1
    %423 = vsyncpa [#allocation7], 1
    %s424 = scalar_lea.sflag [#allocation7], 1
    %425 = vsyncpa %s424, 1

</llo_original>
